<compile_context>
chip_gen: v7x
topology: tpu7x:2x2x1
jax: 0.10.0
libtpu: 0.0.40
codegen_flags: <defaults>
</compile_context>

<pallas_src>
import functools

import jax
import jax.numpy as jnp
from jax import lax
from jax.experimental import pallas as pl
from jax.experimental.pallas import tpu as pltpu


# ----------------------------------------------------------------------------
# small helpers
# ----------------------------------------------------------------------------
def _round_up(x, m):
    return ((x + m - 1) // m) * m


def _cdiv(a, b):
    return -(-a // b)


def _tpu_vmem_bytes():
    """Physical VMEM of the current chip (per core).  Conservative fallback."""
    try:
        info = pltpu.get_tpu_info()
        v = int(getattr(info, "vmem_capacity_bytes", 0) or 0)
        if v > 0:
            return v
    except Exception:
        pass
    return 64 * 1024 * 1024  # v7x per-core VMEM (most restrictive common case)


def _vmem_plan():
    """(vmem_limit_bytes for the pallas_call, byte budget for tile sizing)."""
    phys = _tpu_vmem_bytes()
    limit = min(phys - 16 * 1024 * 1024, 100 * 1024 * 1024)
    limit = max(limit, 32 * 1024 * 1024)
    budget = int(limit * 0.6)  # double-buffered streams + f32 temporaries
    return int(limit), budget


def _default_num_splits():
    """2 on chips with two TensorCores behind one device, else 1."""
    try:
        kind = jax.devices()[0].device_kind.lower()
    except Exception:
        return 1
    for tag in ("v4", "v5p", "v7"):
        if tag in kind:
            return 2
    return 1


def _resolve_splits(num_splits, real_tiles):
    if num_splits is None:
        num_splits = _default_num_splits()
    num_splits = max(1, min(int(num_splits), 2))  # kernel supports 1 or 2
    if real_tiles < num_splits:
        num_splits = 1  # guarantees every split starts on a non-padding tile
    return num_splits


_TARGET_STREAM_BYTES = 4 << 20  # ~4 MiB streamed per grid step (review: 2-8)


def _choose_tile(n_cols, per_col_stream, per_col_work, *, max_tile_cols,
                 vmem_budget):
    """Largest 128-multiple tile that hits the streaming target and fits VMEM."""
    t = int(max_tile_cols)
    t = min(t, max(_TARGET_STREAM_BYTES // max(per_col_stream, 1), 128))
    t = min(t, max(vmem_budget // max(per_col_work, 1), 128))
    t = min(t, _round_up(max(n_cols, 1), 128))
    return max(128, (t // 128) * 128)


# ----------------------------------------------------------------------------
# Kernel 1: supervised-contrastive branch (mask provided)
# ----------------------------------------------------------------------------
def _supcon_mask_kernel(anchor_ref, feat_ref, mask_ref,
                        m_out, s_out, t_out, c_out,
                        m_sc, s_sc, t_sc, c_sc, *,
                        n_valid, tile_n, b, inv_t, pad_exists):
    si = pl.program_id(0)           # megacore split ("parallel")
    ki = pl.program_id(1)           # streamed tile within split ("arbitrary")
    inner = pl.num_programs(1)

    @pl.when(ki == 0)
    def _init():
        m_sc[...] = jnp.full_like(m_sc, -jnp.inf)
        s_sc[...] = jnp.zeros_like(s_sc)
        t_sc[...] = jnp.zeros_like(t_sc)
        c_sc[...] = jnp.zeros_like(c_sc)

    # (B, tile) logits for this tile.  anchors (B, D) x features (D, tile):
    # native-dtype MXU feed (bf16 stays bf16), f32 accumulation.
    adc = lax.dot_general(
        anchor_ref[...], feat_ref[...],
        dimension_numbers=(((1,), (0,)), ((), ())),
        preferred_element_type=jnp.float32,
    ) * inv_t
    maskf = mask_ref[...].astype(jnp.float32)

    def _accum(a_max, a_sum, pm):
        # online logsumexp over the contrast dim + fused positive-pair sums:
        #   sum_j mask*log_prob = sum_j(mask*adc) - sum_j(mask)*(M + log denom)
        tile_max = jnp.max(a_max, axis=1, keepdims=True)
        m_prev = m_sc[...]
        m_new = jnp.maximum(m_prev, tile_max)
        alpha = jnp.exp(m_prev - m_new)                 # 0 on the first tile
        s_sc[...] = s_sc[...] * alpha + jnp.sum(jnp.exp(a_sum - m_new),
                                                axis=1, keepdims=True)
        m_sc[...] = m_new
        t_sc[...] = t_sc[...] + jnp.sum(pm * adc, axis=1, keepdims=True)
        c_sc[...] = c_sc[...] + jnp.sum(pm, axis=1, keepdims=True)

    col_start = (si * inner + ki) * tile_n
    needs_edge = col_start < b                          # tile contains self cols
    if pad_exists:
        needs_edge = jnp.logical_or(needs_edge, col_start + tile_n > n_valid)

    @pl.when(jnp.logical_not(needs_edge))
    def _fast():                                        # interior tile: no masks
        _accum(adc, adc, maskf)

    @pl.when(needs_edge)
    def _edge():                                        # self-exclusion / padding
        col = col_start + lax.broadcasted_iota(jnp.int32, adc.shape, 1)
        row = lax.broadcasted_iota(jnp.int32, adc.shape, 0)
        valid = col < n_valid
        not_self = jnp.logical_and(valid, col != row)
        a_max = jnp.where(valid, adc, -jnp.inf)         # max incl. self (ref)
        a_sum = jnp.where(not_self, adc, -jnp.inf)      # denom excl. self
        pm = jnp.where(col != row, maskf, 0.0)          # pad cols already 0
        _accum(a_max, a_sum, pm)

    @pl.when(ki == inner - 1)
    def _fin():
        m_out[0] = m_sc[...]
        s_out[0] = s_sc[...]
        t_out[0] = t_sc[...]
        c_out[0] = c_sc[...]


def supcon_loss_with_mask(features, mask, batch_size,
                          temperature=0.07, base_temperature=0.07, *,
                          compute_dtype=jnp.bfloat16,
                          max_tile_cols=16384, num_splits=None):
    n, d = features.shape
    b = int(batch_size)
    f_bytes = int(jnp.dtype(compute_dtype).itemsize)

    vmem_limit, budget = _vmem_plan()
    per_col_stream = d * f_bytes + b * f_bytes          # feature tile + mask tile
    per_col_work = 2 * per_col_stream + 4 * b * 4       # double-buffer + f32 temps
    tile_n = _choose_tile(n, per_col_stream, per_col_work,
                          max_tile_cols=max_tile_cols, vmem_budget=budget)

    real_tiles = _cdiv(n, tile_n)
    n_split = _resolve_splits(num_splits, real_tiles)
    inner = _cdiv(real_tiles, n_split)
    n_pad = n_split * inner * tile_n
    pad_exists = n_pad > n
    inv_t = 1.0 / float(temperature)

    anchors = features[:b].astype(compute_dtype)                     # (B, D) pinned
    # cast -> transpose -> zero-pad fuse into ONE XLA pass; the kernel then sees
    # lane-dense (D, tile) blocks.  (Producers could emit (D, N) bf16 directly.)
    feats_t = jnp.pad(features.T.astype(compute_dtype), ((0, 0), (0, n_pad - n)))
    mask_p = jnp.pad(mask.astype(compute_dtype), ((0, 0), (0, n_pad - n)))

    kernel = functools.partial(
        _supcon_mask_kernel, n_valid=n, tile_n=tile_n, b=b,
        inv_t=inv_t, pad_exists=pad_exists)

    part_shape = jax.ShapeDtypeStruct((n_split, b, 1), jnp.float32)
    part_spec = pl.BlockSpec((1, b, 1), lambda si, ki: (si, 0, 0))

    # NOTE: if xprof still shows exposed DMA after the tile enlargement, add
    # pipeline_mode=pl.Buffered(3) to the two streamed BlockSpecs below.
    m_p, s_p, t_p, c_p = pl.pallas_call(
        kernel,
        out_shape=(part_shape,) * 4,
        grid_spec=pltpu.PrefetchScalarGridSpec(
            num_scalar_prefetch=0,
            grid=(n_split, inner),
            in_specs=[
                pl.BlockSpec((b, d), lambda si, ki: (0, 0)),              # anchors
                pl.BlockSpec((d, tile_n), lambda si, ki: (0, si * inner + ki)),
                pl.BlockSpec((b, tile_n), lambda si, ki: (0, si * inner + ki)),
            ],
            out_specs=(part_spec,) * 4,
            scratch_shapes=[pltpu.VMEM((b, 1), jnp.float32)] * 4,
        ),
        compiler_params=pltpu.CompilerParams(
            dimension_semantics=("parallel", "arbitrary"),
            vmem_limit_bytes=vmem_limit,
        ),
        cost_estimate=pl.CostEstimate(
            flops=int(2 * b * n_pad * d + 8 * b * n_pad),
            transcendentals=int(b * n_pad),
            bytes_accessed=int(n_pad * d * f_bytes + b * n_pad * f_bytes
                               + b * d * f_bytes + 16 * b * n_split),
        ),
    )(anchors, feats_t, mask_p)

    # tiny O(n_split * B) cross-split / cross-core combine in JAX
    m_c, s_c, t_c, c_c = (x[..., 0] for x in (m_p, s_p, t_p, c_p))   # (S, B)
    big_m = jnp.max(m_c, axis=0)
    denom = jnp.sum(s_c * jnp.exp(m_c - big_m[None, :]), axis=0)
    t_sum = jnp.sum(t_c, axis=0)
    c_sum = jnp.sum(c_c, axis=0)
    # NOTE: anchors with zero positives give c_sum == 0 -> NaN, matching the
    # PyTorch reference's own behaviour (no clamping on purpose).
    mean_log_prob_pos = t_sum / c_sum - big_m - jnp.log(denom + 1e-12)
    loss = -(temperature / base_temperature) * mean_log_prob_pos
    return jnp.mean(loss)


# ----------------------------------------------------------------------------
# Kernel 2: MoCo / InfoNCE branch (mask is None)
# ----------------------------------------------------------------------------
def _supcon_moco_kernel(q_ref, k_ref, queue_ref,
                        m_out, s_out, lp_out,
                        m_sc, s_sc, lp_sc, *,
                        k_valid, tile_k, inv_t, pad_exists):
    si = pl.program_id(0)
    ji = pl.program_id(1)
    inner = pl.num_programs(1)

    @pl.when(ji == 0)
    def _init():
        # positive logit l_pos = <q, k> / T  (tiny; recomputed once per split)
        lp = jnp.sum(q_ref[...].astype(jnp.float32)
                     * k_ref[...].astype(jnp.float32),
                     axis=1, keepdims=True) * inv_t
        lp_sc[...] = lp
        m_sc[...] = jnp.full_like(m_sc, -jnp.inf)
        s_sc[...] = jnp.zeros_like(s_sc)

    # negative logits for this queue tile: q (B, D) x queue (D, tile)
    ln = lax.dot_general(
        q_ref[...], queue_ref[...],
        dimension_numbers=(((1,), (0,)), ((), ())),
        preferred_element_type=jnp.float32,
    ) * inv_t

    def _accum(l_masked):
        tile_max = jnp.max(l_masked, axis=1, keepdims=True)
        m_prev = m_sc[...]
        m_new = jnp.maximum(m_prev, tile_max)
        s_sc[...] = (s_sc[...] * jnp.exp(m_prev - m_new)
                     + jnp.sum(jnp.exp(l_masked - m_new), axis=1, keepdims=True))
        m_sc[...] = m_new

    if pad_exists:
        col_start = (si * inner + ji) * tile_k
        needs_edge = col_start + tile_k > k_valid

        @pl.when(jnp.logical_not(needs_edge))
        def _fast():
            _accum(ln)

        @pl.when(needs_edge)
        def _edge():
            col = col_start + lax.broadcasted_iota(jnp.int32, ln.shape, 1)
            _accum(jnp.where(col < k_valid, ln, -jnp.inf))
    else:
        _accum(ln)

    @pl.when(ji == inner - 1)
    def _fin():
        m_out[0] = m_sc[...]
        s_out[0] = s_sc[...]
        lp_out[0] = lp_sc[...]


def supcon_loss_no_mask(features, batch_size, temperature=0.07, *,
                        compute_dtype=jnp.bfloat16,
                        max_tile_cols=16384, num_splits=None):
    n, d = features.shape
    b = int(batch_size)
    kq = n - 2 * b
    if kq <= 0:
        # no negatives: cross-entropy over the single (correct) class is 0
        return jnp.asarray(0.0, jnp.float32)
    f_bytes = int(jnp.dtype(compute_dtype).itemsize)

    vmem_limit, budget = _vmem_plan()
    per_col_stream = d * f_bytes
    per_col_work = 2 * per_col_stream + 3 * b * 4
    tile_k = _choose_tile(kq, per_col_stream, per_col_work,
                          max_tile_cols=max_tile_cols, vmem_budget=budget)

    real_tiles = _cdiv(kq, tile_k)
    n_split = _resolve_splits(num_splits, real_tiles)
    inner = _cdiv(real_tiles, n_split)
    kq_pad = n_split * inner * tile_k
    pad_exists = kq_pad > kq
    inv_t = 1.0 / float(temperature)

    q = features[:b].astype(compute_dtype)
    k = features[b:2 * b].astype(compute_dtype)
    queue_t = jnp.pad(features[2 * b:].T.astype(compute_dtype),
                      ((0, 0), (0, kq_pad - kq)))

    kernel = functools.partial(
        _supcon_moco_kernel, k_valid=kq, tile_k=tile_k,
        inv_t=inv_t, pad_exists=pad_exists)

    part_shape = jax.ShapeDtypeStruct((n_split, b, 1), jnp.float32)
    part_spec = pl.BlockSpec((1, b, 1), lambda si, ji: (si, 0, 0))

    m_p, s_p, lp_p = pl.pallas_call(
        kernel,
        out_shape=(part_shape,) * 3,
        grid_spec=pltpu.PrefetchScalarGridSpec(
            num_scalar_prefetch=0,
            grid=(n_split, inner),
            in_specs=[
                pl.BlockSpec((b, d), lambda si, ji: (0, 0)),              # q
                pl.BlockSpec((b, d), lambda si, ji: (0, 0)),              # k
                pl.BlockSpec((d, tile_k), lambda si, ji: (0, si * inner + ji)),
            ],
            out_specs=(part_spec,) * 3,
            scratch_shapes=[pltpu.VMEM((b, 1), jnp.float32)] * 3,
        ),
        compiler_params=pltpu.CompilerParams(
            dimension_semantics=("parallel", "arbitrary"),
            vmem_limit_bytes=vmem_limit,
        ),
        cost_estimate=pl.CostEstimate(
            flops=int(2 * b * kq_pad * d + 2 * b * d + 4 * b * kq_pad),
            transcendentals=int(b * kq_pad),
            bytes_accessed=int(kq_pad * d * f_bytes + 2 * b * d * f_bytes
                               + 12 * b * n_split),
        ),
    )(q, k, queue_t)

    m_c, s_c = m_p[..., 0], s_p[..., 0]           # (S, B)
    lpos = lp_p[0, :, 0]                          # (B,)
    big_m = jnp.maximum(jnp.max(m_c, axis=0), lpos)
    denom = (jnp.sum(s_c * jnp.exp(m_c - big_m[None, :]), axis=0)
             + jnp.exp(lpos - big_m))
    lse = big_m + jnp.log(denom)
    return jnp.mean(lse - lpos)                   # cross_entropy(label=0)


# ----------------------------------------------------------------------------
# Pure-JAX references (correctness checks)
# ----------------------------------------------------------------------------
def _ref_mask(features, mask, b, t=0.07, bt=0.07):
    adc = (features[:b] @ features.T) / t
    logits = adc - jnp.max(adc, axis=1, keepdims=True)
    lm = jnp.ones_like(mask).at[jnp.arange(b), jnp.arange(b)].set(0.0)
    mask = mask * lm
    exp_logits = jnp.exp(logits) * lm
    log_prob = logits - jnp.log(exp_logits.sum(1, keepdims=True) + 1e-12)
    mlpp = (mask * log_prob).sum(1) / mask.sum(1)
    return jnp.mean(-(t / bt) * mlpp)


def _ref_no_mask(features, b, t=0.07):
    q, k, queue = features[:b], features[b:2 * b], features[2 * b:]
    l_pos = jnp.sum(q * k, axis=1, keepdims=True)
    l_neg = q @ queue.T
    logits = jnp.concatenate([l_pos, l_neg], axis=1) / t
    lse = jax.nn.logsumexp(logits, axis=1)
    return jnp.mean(lse - logits[:, 0])


if __name__ == "__main__":
    key = jax.random.PRNGKey(0)
    D = 32
    B = 8
    TEMP = 0.07
    BASE_TEMP = 0.07
    k1, k2, k3, k4 = jax.random.split(key, 4)

    # ----- branch 1A: supervised-contrastive, two views, single tile, f32 -----
    N1 = 2 * B
    feats1 = jax.random.normal(k1, (N1, D), jnp.float32)
    feats1 = feats1 / jnp.linalg.norm(feats1, axis=1, keepdims=True)
    labels1 = jnp.concatenate([jnp.arange(B) % 4, jnp.arange(B) % 4])
    mask1 = (labels1[:B, None] == labels1[None, :]).astype(jnp.float32)

    loss1 = supcon_loss_with_mask(feats1, mask1, B, TEMP, BASE_TEMP,
                                  compute_dtype=jnp.float32)
    jax.block_until_ready(loss1)
    ref1 = _ref_mask(feats1, mask1, B, TEMP, BASE_TEMP)
    assert jnp.allclose(loss1, ref1, rtol=1e-4, atol=1e-4), (loss1, ref1)

    # ----- branch 1B: multi-tile + padding + 2-way split path -----
    N1b = 300                                     # not a tile multiple on purpose
    feats1b = jax.random.normal(k2, (N1b, D), jnp.float32)
    feats1b = feats1b / jnp.linalg.norm(feats1b, axis=1, keepdims=True)
    labels1b = jax.random.randint(k3, (N1b,), 0, 4)
    mask1b = (labels1b[:B, None] == labels1b[None, :]).astype(jnp.float32)
    ref1b = _ref_mask(feats1b, mask1b, B, TEMP, BASE_TEMP)

    loss1b_f32 = supcon_loss_with_mask(feats1b, mask1b, B, TEMP, BASE_TEMP,
                                       compute_dtype=jnp.float32,
                                       max_tile_cols=128, num_splits=2)
    jax.block_until_ready(loss1b_f32)
    assert jnp.allclose(loss1b_f32, ref1b, rtol=1e-4, atol=1e-4), (loss1b_f32, ref1b)

    feats1b_q = feats1b.astype(jnp.bfloat16).astype(jnp.float32)
    ref1b_q = _ref_mask(feats1b_q, mask1b, B, TEMP, BASE_TEMP)
    loss1b_bf16 = supcon_loss_with_mask(feats1b, mask1b, B, TEMP, BASE_TEMP,
                                        max_tile_cols=128, num_splits=2)
    jax.block_until_ready(loss1b_bf16)
    assert jnp.allclose(loss1b_bf16, ref1b_q, rtol=2e-3, atol=2e-3), (loss1b_bf16, ref1b_q)

    # ----- branch 2: MoCo / InfoNCE, queue streamed over split + padding -----
    QUEUE = 300
    N2 = 2 * B + QUEUE
    feats2 = jax.random.normal(k4, (N2, D), jnp.float32)
    feats2 = feats2 / jnp.linalg.norm(feats2, axis=1, keepdims=True)
    ref2 = _ref_no_mask(feats2, B, TEMP)

    loss2_f32 = supcon_loss_no_mask(feats2, B, TEMP, compute_dtype=jnp.float32,
                                    max_tile_cols=128, num_splits=2)
    jax.block_until_ready(loss2_f32)
    assert jnp.allclose(loss2_f32, ref2, rtol=1e-4, atol=1e-4), (loss2_f32, ref2)

    feats2_q = feats2.astype(jnp.bfloat16).astype(jnp.float32)
    ref2_q = _ref_no_mask(feats2_q, B, TEMP)
    loss2_bf16 = supcon_loss_no_mask(feats2, B, TEMP,
                                     max_tile_cols=128, num_splits=2)
    jax.block_until_ready(loss2_bf16)
    assert jnp.allclose(loss2_bf16, ref2_q, rtol=2e-3, atol=2e-3), (loss2_bf16, ref2_q)

    # ----- default (auto tile / auto split) configuration smoke test -----
    loss_def = supcon_loss_with_mask(feats1b, mask1b, B, TEMP, BASE_TEMP)
    jax.block_until_ready(loss_def)
    assert jnp.allclose(loss_def, ref1b_q, rtol=2e-3, atol=2e-3), (loss_def, ref1b_q)

    print("KERNEL_OK")
</pallas_src>

<mosaic_0001>
module attributes {stable_mosaic.version = 11 : i64} {
  func.func @_supcon_mask_kernel(%arg0: i32, %arg1: i32, %arg2: memref<8x32xf32, #tpu.memory_space<vmem>>, %arg3: memref<32x128xf32, #tpu.memory_space<vmem>>, %arg4: memref<8x128xf32, #tpu.memory_space<vmem>>, %arg5: memref<1x8x1xf32, #tpu.memory_space<vmem>>, %arg6: memref<1x8x1xf32, #tpu.memory_space<vmem>>, %arg7: memref<1x8x1xf32, #tpu.memory_space<vmem>>, %arg8: memref<1x8x1xf32, #tpu.memory_space<vmem>>, %arg9: memref<8x1xf32, #tpu.memory_space<vmem>>, %arg10: memref<8x1xf32, #tpu.memory_space<vmem>>, %arg11: memref<8x1xf32, #tpu.memory_space<vmem>>, %arg12: memref<8x1xf32, #tpu.memory_space<vmem>>) attributes {dimension_semantics = [#tpu.dimension_semantics<parallel>, #tpu.dimension_semantics<arbitrary>], iteration_bounds = array<i64: 1, 1>, scalar_prefetch = 0 : i64, scratch_operands = 4 : i64, tpu.core_type = #tpu.core_type<tc>, window_params = [{pipeline_mode = #tpu.pipeline_mode<synchronous>, transform_indices = @transform_0, window_bounds = array<i64: 8, 32>}, {transform_indices = @transform_1, window_bounds = array<i64: 32, 128>}, {transform_indices = @transform_2, window_bounds = array<i64: 8, 128>}, {transform_indices = @transform_3, window_bounds = array<i64: 1, 8, 1>}, {transform_indices = @transform_4, window_bounds = array<i64: 1, 8, 1>}, {transform_indices = @transform_5, window_bounds = array<i64: 1, 8, 1>}, {transform_indices = @transform_6, window_bounds = array<i64: 1, 8, 1>}]} {
    %c0_i32 = arith.constant 0 : i32
    %0 = arith.cmpi eq, %arg1, %c0_i32 : i32
    %1 = arith.extui %0 : i1 to i32
    %c0_i32_0 = arith.constant 0 : i32
    %2 = arith.cmpi ne, %1, %c0_i32_0 : i32
    scf.if %2 {
      %cst_12 = arith.constant 0xFF800000 : f32
      %24 = vector.broadcast %cst_12 : f32 to vector<8x1xf32>
      %c0_13 = arith.constant 0 : index
      %c0_14 = arith.constant 0 : index
      %25 = vector.load %arg9[%c0_13, %c0_14] : memref<8x1xf32, #tpu.memory_space<vmem>>, vector<8x1xf32>
      tpu.vector_store %arg9[%c0_13, %c0_14], %24 {strides = array<i32>} : memref<8x1xf32, #tpu.memory_space<vmem>>, vector<8x1xf32>,
      %cst_15 = arith.constant 0.000000e+00 : f32
      %26 = vector.broadcast %cst_15 : f32 to vector<8x1xf32>
      %c0_16 = arith.constant 0 : index
      %c0_17 = arith.constant 0 : index
      %27 = vector.load %arg10[%c0_16, %c0_17] : memref<8x1xf32, #tpu.memory_space<vmem>>, vector<8x1xf32>
      tpu.vector_store %arg10[%c0_16, %c0_17], %26 {strides = array<i32>} : memref<8x1xf32, #tpu.memory_space<vmem>>, vector<8x1xf32>,
      %cst_18 = arith.constant 0.000000e+00 : f32
      %28 = vector.broadcast %cst_18 : f32 to vector<8x1xf32>
      %c0_19 = arith.constant 0 : index
      %c0_20 = arith.constant 0 : index
      %29 = vector.load %arg11[%c0_19, %c0_20] : memref<8x1xf32, #tpu.memory_space<vmem>>, vector<8x1xf32>
      tpu.vector_store %arg11[%c0_19, %c0_20], %28 {strides = array<i32>} : memref<8x1xf32, #tpu.memory_space<vmem>>, vector<8x1xf32>,
      %cst_21 = arith.constant 0.000000e+00 : f32
      %30 = vector.broadcast %cst_21 : f32 to vector<8x1xf32>
      %c0_22 = arith.constant 0 : index
      %c0_23 = arith.constant 0 : index
      %31 = vector.load %arg12[%c0_22, %c0_23] : memref<8x1xf32, #tpu.memory_space<vmem>>, vector<8x1xf32>
      tpu.vector_store %arg12[%c0_22, %c0_23], %30 {strides = array<i32>} : memref<8x1xf32, #tpu.memory_space<vmem>>, vector<8x1xf32>,
    } else {
    }
    %c0 = arith.constant 0 : index
    %c0_1 = arith.constant 0 : index
    %3 = vector.load %arg2[%c0, %c0_1] : memref<8x32xf32, #tpu.memory_space<vmem>>, vector<8x32xf32>
    %c0_2 = arith.constant 0 : index
    %c0_3 = arith.constant 0 : index
    %4 = vector.load %arg3[%c0_2, %c0_3] : memref<32x128xf32, #tpu.memory_space<vmem>>, vector<32x128xf32>
    %cst = arith.constant dense<0.000000e+00> : vector<8x128xf32>
    %5 = tpu.matmul %3, %4, %cst {dimension_numbers = #tpu.dot_dimension_numbers<[1], [0], [0], [1], [0, 0, 1, 1], [], []>} : vector<8x32xf32>, vector<32x128xf32>, vector<8x128xf32> -> vector<8x128xf32>
    %cst_4 = arith.constant 14.2857141 : f32
    %6 = vector.broadcast %cst_4 : f32 to vector<8x128xf32>
    %7 = arith.mulf %5, %6 : vector<8x128xf32>
    %c0_5 = arith.constant 0 : index
    %c0_6 = arith.constant 0 : index
    %8 = vector.load %arg4[%c0_5, %c0_6] : memref<8x128xf32, #tpu.memory_space<vmem>>, vector<8x128xf32>
    %c1_i32 = arith.constant 1 : i32
    %9 = arith.muli %arg0, %c1_i32 : i32
    %10 = arith.addi %9, %arg1 : i32
    %c128_i32 = arith.constant 128 : i32
    %11 = arith.muli %10, %c128_i32 : i32
    %c8_i32 = arith.constant 8 : i32
    %12 = arith.cmpi slt, %11, %c8_i32 : i32
    %c128_i32_7 = arith.constant 128 : i32
    %13 = arith.addi %11, %c128_i32_7 : i32
    %c16_i32 = arith.constant 16 : i32
    %14 = arith.cmpi sgt, %13, %c16_i32 : i32
    %15 = arith.ori %12, %14 : i1
    %true = arith.constant true
    %16 = arith.xori %15, %true : i1
    %17 = arith.extui %16 : i1 to i32
    %c0_i32_8 = arith.constant 0 : i32
    %18 = arith.cmpi ne, %17, %c0_i32_8 : i32
    scf.if %18 {
      %cst_12 = arith.constant dense<0xFF800000> : vector<8xf32>
      %24 = vector.multi_reduction <maximumf>, %7, %cst_12 [1] : vector<8x128xf32> to vector<8xf32>
      %25 = vector.shape_cast %24 : vector<8xf32> to vector<8x1xf32>
      %c0_13 = arith.constant 0 : index
      %c0_14 = arith.constant 0 : index
      %26 = vector.load %arg9[%c0_13, %c0_14] : memref<8x1xf32, #tpu.memory_space<vmem>>, vector<8x1xf32>
      %27 = arith.maximumf %26, %25 : vector<8x1xf32>
      %28 = arith.subf %26, %27 : vector<8x1xf32>
      %29 = math.exp %28 : vector<8x1xf32>
      %c0_15 = arith.constant 0 : index
      %c0_16 = arith.constant 0 : index
      %30 = vector.load %arg10[%c0_15, %c0_16] : memref<8x1xf32, #tpu.memory_space<vmem>>, vector<8x1xf32>
      %31 = arith.mulf %30, %29 : vector<8x1xf32>
      %32 = vector.broadcast %27 : vector<8x1xf32> to vector<8x128xf32>
      %33 = arith.subf %7, %32 : vector<8x128xf32>
      %34 = math.exp %33 : vector<8x128xf32>
      %cst_17 = arith.constant dense<0.000000e+00> : vector<8xf32>
      %35 = vector.multi_reduction <add>, %34, %cst_17 [1] : vector<8x128xf32> to vector<8xf32>
      %36 = vector.shape_cast %35 : vector<8xf32> to vector<8x1xf32>
      %37 = arith.addf %31, %36 : vector<8x1xf32>
      %c0_18 = arith.constant 0 : index
      %c0_19 = arith.constant 0 : index
      %38 = vector.load %arg10[%c0_18, %c0_19] : memref<8x1xf32, #tpu.memory_space<vmem>>, vector<8x1xf32>
      tpu.vector_store %arg10[%c0_18, %c0_19], %37 {strides = array<i32>} : memref<8x1xf32, #tpu.memory_space<vmem>>, vector<8x1xf32>,
      %c0_20 = arith.constant 0 : index
      %c0_21 = arith.constant 0 : index
      %39 = vector.load %arg9[%c0_20, %c0_21] : memref<8x1xf32, #tpu.memory_space<vmem>>, vector<8x1xf32>
      tpu.vector_store %arg9[%c0_20, %c0_21], %27 {strides = array<i32>} : memref<8x1xf32, #tpu.memory_space<vmem>>, vector<8x1xf32>,
      %c0_22 = arith.constant 0 : index
      %c0_23 = arith.constant 0 : index
      %40 = vector.load %arg11[%c0_22, %c0_23] : memref<8x1xf32, #tpu.memory_space<vmem>>, vector<8x1xf32>
      %41 = arith.mulf %8, %7 : vector<8x128xf32>
      %cst_24 = arith.constant dense<0.000000e+00> : vector<8xf32>
      %42 = vector.multi_reduction <add>, %41, %cst_24 [1] : vector<8x128xf32> to vector<8xf32>
      %43 = vector.shape_cast %42 : vector<8xf32> to vector<8x1xf32>
      %44 = arith.addf %40, %43 : vector<8x1xf32>
      %c0_25 = arith.constant 0 : index
      %c0_26 = arith.constant 0 : index
      %45 = vector.load %arg11[%c0_25, %c0_26] : memref<8x1xf32, #tpu.memory_space<vmem>>, vector<8x1xf32>
      tpu.vector_store %arg11[%c0_25, %c0_26], %44 {strides = array<i32>} : memref<8x1xf32, #tpu.memory_space<vmem>>, vector<8x1xf32>,
      %c0_27 = arith.constant 0 : index
      %c0_28 = arith.constant 0 : index
      %46 = vector.load %arg12[%c0_27, %c0_28] : memref<8x1xf32, #tpu.memory_space<vmem>>, vector<8x1xf32>
      %cst_29 = arith.constant dense<0.000000e+00> : vector<8xf32>
      %47 = vector.multi_reduction <add>, %8, %cst_29 [1] : vector<8x128xf32> to vector<8xf32>
      %48 = vector.shape_cast %47 : vector<8xf32> to vector<8x1xf32>
      %49 = arith.addf %46, %48 : vector<8x1xf32>
      %c0_30 = arith.constant 0 : index
      %c0_31 = arith.constant 0 : index
      %50 = vector.load %arg12[%c0_30, %c0_31] : memref<8x1xf32, #tpu.memory_space<vmem>>, vector<8x1xf32>
      tpu.vector_store %arg12[%c0_30, %c0_31], %49 {strides = array<i32>} : memref<8x1xf32, #tpu.memory_space<vmem>>, vector<8x1xf32>,
    } else {
    }
    %19 = arith.extui %15 : i1 to i32
    %c0_i32_9 = arith.constant 0 : i32
    %20 = arith.cmpi ne, %19, %c0_i32_9 : i32
    scf.if %20 {
      %24 = tpu.iota {dimensions = array<i32: 1>} : vector<8x128xi32>
      %25 = vector.broadcast %11 : i32 to vector<8x128xi32>
      %26 = arith.addi %25, %24 : vector<8x128xi32>
      %27 = tpu.iota {dimensions = array<i32: 0>} : vector<8x128xi32>
      %c16_i32_12 = arith.constant 16 : i32
      %28 = vector.broadcast %c16_i32_12 : i32 to vector<8x128xi32>
      %29 = arith.cmpi slt, %26, %28 : vector<8x128xi32>
      %30 = arith.cmpi ne, %26, %27 : vector<8x128xi32>
      %31 = arith.andi %29, %30 : vector<8x128xi1>
      %cst_13 = arith.constant 0xFF800000 : f32
      %32 = vector.broadcast %cst_13 : f32 to vector<8x128xf32>
      %33 = arith.select %29, %7, %32 : vector<8x128xi1>, vector<8x128xf32>
      %cst_14 = arith.constant 0xFF800000 : f32
      %34 = vector.broadcast %cst_14 : f32 to vector<8x128xf32>
      %35 = arith.select %31, %7, %34 : vector<8x128xi1>, vector<8x128xf32>
      %36 = arith.cmpi ne, %26, %27 : vector<8x128xi32>
      %cst_15 = arith.constant 0.000000e+00 : f32
      %37 = vector.broadcast %cst_15 : f32 to vector<8x128xf32>
      %38 = arith.select %36, %8, %37 : vector<8x128xi1>, vector<8x128xf32>
      %cst_16 = arith.constant dense<0xFF800000> : vector<8xf32>
      %39 = vector.multi_reduction <maximumf>, %33, %cst_16 [1] : vector<8x128xf32> to vector<8xf32>
      %40 = vector.shape_cast %39 : vector<8xf32> to vector<8x1xf32>
      %c0_17 = arith.constant 0 : index
      %c0_18 = arith.constant 0 : index
      %41 = vector.load %arg9[%c0_17, %c0_18] : memref<8x1xf32, #tpu.memory_space<vmem>>, vector<8x1xf32>
      %42 = arith.maximumf %41, %40 : vector<8x1xf32>
      %43 = arith.subf %41, %42 : vector<8x1xf32>
      %44 = math.exp %43 : vector<8x1xf32>
      %c0_19 = arith.constant 0 : index
      %c0_20 = arith.constant 0 : index
      %45 = vector.load %arg10[%c0_19, %c0_20] : memref<8x1xf32, #tpu.memory_space<vmem>>, vector<8x1xf32>
      %46 = arith.mulf %45, %44 : vector<8x1xf32>
      %47 = vector.broadcast %42 : vector<8x1xf32> to vector<8x128xf32>
      %48 = arith.subf %35, %47 : vector<8x128xf32>
      %49 = math.exp %48 : vector<8x128xf32>
      %cst_21 = arith.constant dense<0.000000e+00> : vector<8xf32>
      %50 = vector.multi_reduction <add>, %49, %cst_21 [1] : vector<8x128xf32> to vector<8xf32>
      %51 = vector.shape_cast %50 : vector<8xf32> to vector<8x1xf32>
      %52 = arith.addf %46, %51 : vector<8x1xf32>
      %c0_22 = arith.constant 0 : index
      %c0_23 = arith.constant 0 : index
      %53 = vector.load %arg10[%c0_22, %c0_23] : memref<8x1xf32, #tpu.memory_space<vmem>>, vector<8x1xf32>
      tpu.vector_store %arg10[%c0_22, %c0_23], %52 {strides = array<i32>} : memref<8x1xf32, #tpu.memory_space<vmem>>, vector<8x1xf32>,
      %c0_24 = arith.constant 0 : index
      %c0_25 = arith.constant 0 : index
      %54 = vector.load %arg9[%c0_24, %c0_25] : memref<8x1xf32, #tpu.memory_space<vmem>>, vector<8x1xf32>
      tpu.vector_store %arg9[%c0_24, %c0_25], %42 {strides = array<i32>} : memref<8x1xf32, #tpu.memory_space<vmem>>, vector<8x1xf32>,
      %c0_26 = arith.constant 0 : index
      %c0_27 = arith.constant 0 : index
      %55 = vector.load %arg11[%c0_26, %c0_27] : memref<8x1xf32, #tpu.memory_space<vmem>>, vector<8x1xf32>
      %56 = arith.mulf %38, %7 : vector<8x128xf32>
      %cst_28 = arith.constant dense<0.000000e+00> : vector<8xf32>
      %57 = vector.multi_reduction <add>, %56, %cst_28 [1] : vector<8x128xf32> to vector<8xf32>
      %58 = vector.shape_cast %57 : vector<8xf32> to vector<8x1xf32>
      %59 = arith.addf %55, %58 : vector<8x1xf32>
      %c0_29 = arith.constant 0 : index
      %c0_30 = arith.constant 0 : index
      %60 = vector.load %arg11[%c0_29, %c0_30] : memref<8x1xf32, #tpu.memory_space<vmem>>, vector<8x1xf32>
      tpu.vector_store %arg11[%c0_29, %c0_30], %59 {strides = array<i32>} : memref<8x1xf32, #tpu.memory_space<vmem>>, vector<8x1xf32>,
      %c0_31 = arith.constant 0 : index
      %c0_32 = arith.constant 0 : index
      %61 = vector.load %arg12[%c0_31, %c0_32] : memref<8x1xf32, #tpu.memory_space<vmem>>, vector<8x1xf32>
      %cst_33 = arith.constant dense<0.000000e+00> : vector<8xf32>
      %62 = vector.multi_reduction <add>, %38, %cst_33 [1] : vector<8x128xf32> to vector<8xf32>
      %63 = vector.shape_cast %62 : vector<8xf32> to vector<8x1xf32>
      %64 = arith.addf %61, %63 : vector<8x1xf32>
      %c0_34 = arith.constant 0 : index
      %c0_35 = arith.constant 0 : index
      %65 = vector.load %arg12[%c0_34, %c0_35] : memref<8x1xf32, #tpu.memory_space<vmem>>, vector<8x1xf32>
      tpu.vector_store %arg12[%c0_34, %c0_35], %64 {strides = array<i32>} : memref<8x1xf32, #tpu.memory_space<vmem>>, vector<8x1xf32>,
    } else {
    }
    %c0_i32_10 = arith.constant 0 : i32
    %21 = arith.cmpi eq, %arg1, %c0_i32_10 : i32
    %22 = arith.extui %21 : i1 to i32
    %c0_i32_11 = arith.constant 0 : i32
    %23 = arith.cmpi ne, %22, %c0_i32_11 : i32
    scf.if %23 {
      %c0_12 = arith.constant 0 : index
      %c0_13 = arith.constant 0 : index
      %24 = vector.load %arg9[%c0_12, %c0_13] : memref<8x1xf32, #tpu.memory_space<vmem>>, vector<8x1xf32>
      %c0_14 = arith.constant 0 : index
      %c0_15 = arith.constant 0 : index
      %c0_16 = arith.constant 0 : index
      %25 = vector.load %arg5[%c0_14, %c0_15, %c0_16] : memref<1x8x1xf32, #tpu.memory_space<vmem>>, vector<1x8x1xf32>
      %26 = vector.shape_cast %25 : vector<1x8x1xf32> to vector<8x1xf32>
      %27 = vector.shape_cast %24 : vector<8x1xf32> to vector<1x8x1xf32>
      tpu.vector_store %arg5[%c0_14, %c0_15, %c0_16], %27 {strides = array<i32>} : memref<1x8x1xf32, #tpu.memory_space<vmem>>, vector<1x8x1xf32>,
      %c0_17 = arith.constant 0 : index
      %c0_18 = arith.constant 0 : index
      %28 = vector.load %arg10[%c0_17, %c0_18] : memref<8x1xf32, #tpu.memory_space<vmem>>, vector<8x1xf32>
      %c0_19 = arith.constant 0 : index
      %c0_20 = arith.constant 0 : index
      %c0_21 = arith.constant 0 : index
      %29 = vector.load %arg6[%c0_19, %c0_20, %c0_21] : memref<1x8x1xf32, #tpu.memory_space<vmem>>, vector<1x8x1xf32>
      %30 = vector.shape_cast %29 : vector<1x8x1xf32> to vector<8x1xf32>
      %31 = vector.shape_cast %28 : vector<8x1xf32> to vector<1x8x1xf32>
      tpu.vector_store %arg6[%c0_19, %c0_20, %c0_21], %31 {strides = array<i32>} : memref<1x8x1xf32, #tpu.memory_space<vmem>>, vector<1x8x1xf32>,
      %c0_22 = arith.constant 0 : index
      %c0_23 = arith.constant 0 : index
      %32 = vector.load %arg11[%c0_22, %c0_23] : memref<8x1xf32, #tpu.memory_space<vmem>>, vector<8x1xf32>
      %c0_24 = arith.constant 0 : index
      %c0_25 = arith.constant 0 : index
      %c0_26 = arith.constant 0 : index
      %33 = vector.load %arg7[%c0_24, %c0_25, %c0_26] : memref<1x8x1xf32, #tpu.memory_space<vmem>>, vector<1x8x1xf32>
      %34 = vector.shape_cast %33 : vector<1x8x1xf32> to vector<8x1xf32>
      %35 = vector.shape_cast %32 : vector<8x1xf32> to vector<1x8x1xf32>
      tpu.vector_store %arg7[%c0_24, %c0_25, %c0_26], %35 {strides = array<i32>} : memref<1x8x1xf32, #tpu.memory_space<vmem>>, vector<1x8x1xf32>,
      %c0_27 = arith.constant 0 : index
      %c0_28 = arith.constant 0 : index
      %36 = vector.load %arg12[%c0_27, %c0_28] : memref<8x1xf32, #tpu.memory_space<vmem>>, vector<8x1xf32>
      %c0_29 = arith.constant 0 : index
      %c0_30 = arith.constant 0 : index
      %c0_31 = arith.constant 0 : index
      %37 = vector.load %arg8[%c0_29, %c0_30, %c0_31] : memref<1x8x1xf32, #tpu.memory_space<vmem>>, vector<1x8x1xf32>
      %38 = vector.shape_cast %37 : vector<1x8x1xf32> to vector<8x1xf32>
      %39 = vector.shape_cast %36 : vector<8x1xf32> to vector<1x8x1xf32>
      tpu.vector_store %arg8[%c0_29, %c0_30, %c0_31], %39 {strides = array<i32>} : memref<1x8x1xf32, #tpu.memory_space<vmem>>, vector<1x8x1xf32>,
    } else {
    }
    return
  }
  func.func @transform_0(%arg0: i32, %arg1: i32) -> (i32, i32) {
    %c0_i32 = arith.constant 0 : i32
    %c0_i32_0 = arith.constant 0 : i32
    %c0_i32_1 = arith.constant 0 : i32
    return %c0_i32, %c0_i32_0 : i32, i32
  }
  func.func @transform_1(%arg0: i32, %arg1: i32) -> (i32, i32) {
    %c1_i32 = arith.constant 1 : i32
    %0 = arith.muli %arg0, %c1_i32 : i32
    %1 = arith.addi %0, %arg1 : i32
    %c0_i32 = arith.constant 0 : i32
    %c0_i32_0 = arith.constant 0 : i32
    return %c0_i32, %1 : i32, i32
  }
  func.func @transform_2(%arg0: i32, %arg1: i32) -> (i32, i32) {
    %c1_i32 = arith.constant 1 : i32
    %0 = arith.muli %arg0, %c1_i32 : i32
    %1 = arith.addi %0, %arg1 : i32
    %c0_i32 = arith.constant 0 : i32
    %c0_i32_0 = arith.constant 0 : i32
    return %c0_i32, %1 : i32, i32
  }
  func.func @transform_3(%arg0: i32, %arg1: i32) -> (i32, i32, i32) {
    %c0_i32 = arith.constant 0 : i32
    %c0_i32_0 = arith.constant 0 : i32
    %c0_i32_1 = arith.constant 0 : i32
    return %arg0, %c0_i32, %c0_i32_0 : i32, i32, i32
  }
  func.func @transform_4(%arg0: i32, %arg1: i32) -> (i32, i32, i32) {
    %c0_i32 = arith.constant 0 : i32
    %c0_i32_0 = arith.constant 0 : i32
    %c0_i32_1 = arith.constant 0 : i32
    return %arg0, %c0_i32, %c0_i32_0 : i32, i32, i32
  }
  func.func @transform_5(%arg0: i32, %arg1: i32) -> (i32, i32, i32) {
    %c0_i32 = arith.constant 0 : i32
    %c0_i32_0 = arith.constant 0 : i32
    %c0_i32_1 = arith.constant 0 : i32
    return %arg0, %c0_i32, %c0_i32_0 : i32, i32, i32
  }
  func.func @transform_6(%arg0: i32, %arg1: i32) -> (i32, i32, i32) {
    %c0_i32 = arith.constant 0 : i32
    %c0_i32_0 = arith.constant 0 : i32
    %c0_i32_1 = arith.constant 0 : i32
    return %arg0, %c0_i32, %c0_i32_0 : i32, i32, i32
  }
}

</mosaic_0001>

<llo_original>
// kernel: tpu_custom_call.1
$region0: #{tpu_custom_call.1}
  #allocation0 [shape = 'u32[]', space=smem, size = 0x4, offset = 0x4, fixed_abs, tag = 'smem constant byte address 0x4 - core index']
  #allocation1 [shape = 'u32[144,128]{1,0:T(1,128)}', space=vmem, size = 0x12000, scoped, tag = 'internal scratch']
  #allocation2 [shape = 'f32[8,1]{1,0:T(8,128)}', space=vmem, size = 0x1000, scoped, tag = 'scratch operand']
  #allocation3 [shape = 'f32[8,1]{1,0:T(8,128)}', space=vmem, size = 0x1000, scoped, tag = 'scratch operand']
  #allocation4 [shape = 'f32[8,1]{1,0:T(8,128)}', space=vmem, size = 0x1000, scoped, tag = 'scratch operand']
  #allocation5 [shape = 'f32[8,1]{1,0:T(8,128)}', space=vmem, size = 0x1000, scoped, tag = 'scratch operand']
  %s0 = inlined_call_operand.hbm [shape: f32[8,32], index: 0, kind: input, shape index: {}]
  %s1 = inlined_call_operand.hbm [shape: f32[32,128], index: 1, kind: input, shape index: {}]
  %s2 = inlined_call_operand.hbm [shape: f32[8,128], index: 2, kind: input, shape index: {}]
  %s3 = inlined_call_operand.vmem [shape: f32[1,8,1], index: 3, kind: output, shape index: {0}]
  %s4 = inlined_call_operand.vmem [shape: f32[1,8,1], index: 4, kind: output, shape index: {1}]
  %s5 = inlined_call_operand.vmem [shape: f32[1,8,1], index: 5, kind: output, shape index: {2}]
  %s6 = inlined_call_operand.vmem [shape: f32[1,8,1], index: 6, kind: output, shape index: {3}]
  %7 = xla_tuple %s3, %s4, %s5, %s6
  %s8 = sld [smem:[#allocation0]]
  $region74: #{tpu_custom_call.1} parent=0
    _
  %s10 = ssub.s32 1, %s8
  %s11 = scalar_select 0, %s10, %s8
  $region1: #{tpu_custom_call.1} parent=0
    #allocation6 [shape = 'u8[4096]{0}', space=vmem, size = 0x1000, scoped, tag = 'input window, operand 0, single buffered']
    #allocation7 [shape = 's32[1]{0}', space=sflag, size = 0x4, scoped, tag = 'scoped memory for tpu_custom_call.1']
    #allocation8 [shape = 'u8[16384]{0}', space=vmem, size = 0x4000, scoped, tag = 'input window, operand 1, single buffered']
    #allocation9 [shape = 's32[1]{0}', space=sflag, size = 0x4, scoped, tag = 'scoped memory for tpu_custom_call.1']
    #allocation10 [shape = 'u8[4096]{0}', space=vmem, size = 0x1000, scoped, tag = 'input window, operand 2, single buffered']
    %12 = vsyncpa [#allocation7], 0
    %13 = vsyncpa [#allocation9], 0
    // Predicated region
    $region2: #{tpu_custom_call.1} parent=1 // pred_check
      _
    $region3: #{tpu_custom_call.1} parent=1 // pred_check_branch
      %15 = sbr.rel (0) target = $region5
    $region4: #{tpu_custom_call.1} parent=1 // pred_region
      %s17 = ssub.s32 128, 128
      %18 = vsyncadd [#allocation7], %s17
      %s20 = sshll.u32 [#allocation6], 4
      %s21 = int_to_ptr.vmem [resolvable:$true] %s20
      %23 = dma.hbm_to_vmem [thread:$0]  %s0, 128, %s21, [#allocation7]
    $region5: #{tpu_custom_call.1} parent=1 // pred_fallthru
      _
    // Predicated region
    $region6: #{tpu_custom_call.1} parent=1 // pred_check
      _
    $region7: #{tpu_custom_call.1} parent=1 // pred_check_branch
      %25 = sbr.rel (0) target = $region9
    $region8: #{tpu_custom_call.1} parent=1 // pred_region
      %s26 = sadd.s32 0, 0
      %s28 = ssub.s32 512, 512
      %29 = vsyncadd [#allocation9], %s28
      %s30 = smul.addr %s26, 128
      %s31 = scalar_lea.hbm %s1, %s30
      %s32 = sshll.u32 [#allocation8], 4
      %s33 = int_to_ptr.vmem [resolvable:$true] %s32
      %38 = dma.hbm_to_vmem [thread:$0]  %s31, 512, %s33, [#allocation9], 128, 128, 8
    $region9: #{tpu_custom_call.1} parent=1 // pred_fallthru
      _
    // Predicated region
    $region10: #{tpu_custom_call.1} parent=1 // pred_check
      _
    $region11: #{tpu_custom_call.1} parent=1 // pred_check_branch
      %40 = sbr.rel (0) target = $region13
    $region12: #{tpu_custom_call.1} parent=1 // pred_region
      %s41 = sadd.s32 0, 0
      %s43 = ssub.s32 128, 128
      %44 = vsyncadd [#allocation9], %s43
      %s45 = smul.addr %s41, 128
      %s46 = scalar_lea.hbm %s2, %s45
      %s48 = sshll.u32 [#allocation10], 4
      %s49 = int_to_ptr.vmem [resolvable:$true] %s48
      %51 = dma.hbm_to_vmem [thread:$0]  %s46, 128, %s49, [#allocation9]
    $region13: #{tpu_custom_call.1} parent=1 // pred_fallthru
      _
    // Predicated region
    $region14: #{tpu_custom_call.1} parent=1 // pred_check
      _
    $region15: #{tpu_custom_call.1} parent=1 // pred_check_branch
      %53 = sbr.rel (0) target = $region17
    $region16: #{tpu_custom_call.1} parent=1 // pred_region
      %54 = dma.done [#allocation7], 128
    $region17: #{tpu_custom_call.1} parent=1 // pred_fallthru
      _
    // Predicated region
    $region18: #{tpu_custom_call.1} parent=1 // pred_check
      _
    $region19: #{tpu_custom_call.1} parent=1 // pred_check_branch
      %56 = sbr.rel (0) target = $region21
    $region20: #{tpu_custom_call.1} parent=1 // pred_region
      %57 = dma.done [#allocation9], 512
    $region21: #{tpu_custom_call.1} parent=1 // pred_fallthru
      _
    // Predicated region
    $region22: #{tpu_custom_call.1} parent=1 // pred_check
      _
    $region23: #{tpu_custom_call.1} parent=1 // pred_check_branch
      %59 = sbr.rel (0) target = $region25
    $region24: #{tpu_custom_call.1} parent=1 // pred_region
      %60 = dma.done [#allocation9], 128
    $region25: #{tpu_custom_call.1} parent=1 // pred_fallthru
      _
    %s61 = sadd.s32 0, 0
    %s62 = sadd.s32 0, 0
    %p63 = scmp.eq.s32.totalorder 0, 0
    // Predicated region
    $region26: #{tpu_custom_call.1} parent=1 // pred_check
      %p64 = pneg %p63
    $region27: #{tpu_custom_call.1} parent=1 // pred_check_branch
      %66 = sbr.rel (%p64) target = $region29
    $region28: #{tpu_custom_call.1} parent=1 // pred_region
      %vm67 = vcmask 7168
      %68 = vst.msk [vmem:[#allocation2] sm:$0xff] %vm67, -inf
      %69 = vst.msk [vmem:[#allocation3] sm:$0xff] %vm67, 0.0
      %70 = vst.msk [vmem:[#allocation4] sm:$0xff] %vm67, 0.0
      %71 = vst.msk [vmem:[#allocation5] sm:$0xff] %vm67, 0.0
    $region29: #{tpu_custom_call.1} parent=1 // pred_fallthru
      _
    %v72 = vld [vmem:[#allocation6] sm:$0xff]
    %v73 = vld [vmem:[#allocation8] sm:$0xff]
    %v74 = vld [vmem:[#allocation8 + $0x8] sm:$0xff]
    %v75 = vld [vmem:[#allocation8 + $0x10] sm:$0xff]
    %v76 = vld [vmem:[#allocation8 + $0x18] sm:$0xff]
    %vm77 = vcmask 261120
    %v79 = vsel %vm77, %v72, 0
    %81 = vmatprep.subr.mxu0 0.0
    %82 = vmatpush1.msra.mxu0 %v73
    %83 = vmatprep.subr.mxu0 0.0
    %84 = vmatpush1.msra.mxu0 %v74
    %85 = vmatprep.subr.mxu0 0.0
    %86 = vmatpush1.msra.mxu0 %v75
    %87 = vmatprep.subr.mxu0 0.0
    %88 = vmatpush1.msra.mxu0 %v76
    %89 = vmatprep.subr.mxu0 0.0
    %90 = vmatpush1.msra.mxu0 0.0
    %91 = vmatprep.subr.mxu0 0.0
    %92 = vmatpush1.msra.mxu0 0.0
    %93 = vmatprep.subr.mxu0 0.0
    %94 = vmatpush1.msra.mxu0 0.0
    %95 = vmatprep.subr.mxu0 0.0
    %96 = vmatpush1.msra.mxu0 0.0
    %97 = vmatprep.subr.mxu0 0.0
    %98 = vmatpush1.msra.mxu0 0.0
    %99 = vmatprep.subr.mxu0 0.0
    %100 = vmatpush1.msra.mxu0 0.0
    %101 = vmatprep.subr.mxu0 0.0
    %102 = vmatpush1.msra.mxu0 0.0
    %103 = vmatprep.subr.mxu0 0.0
    %104 = vmatpush1.msra.mxu0 0.0
    %105 = vmatprep.subr.mxu0 0.0
    %106 = vmatpush1.msra.mxu0 0.0
    %107 = vmatprep.subr.mxu0 0.0
    %108 = vmatpush1.msra.mxu0 0.0
    %109 = vmatprep.subr.mxu0 0.0
    %110 = vmatpush1.msra.mxu0 0.0
    %111 = vmatprep.subr.mxu0 0.0
    %112 = vmatpush1.msra.mxu0 0.0
    %113 = vmatprep.subr.mxu0 0.0
    %114 = vmatpush1.msra.mxu0 0.0
    %115 = vmatprep.subr.mxu0 0.0
    %116 = vmatpush1.msra.mxu0 0.0
    %117 = vmatprep.subr.mxu0 0.0
    %118 = vmatpush1.msra.mxu0 0.0
    %119 = vmatprep.subr.mxu0 0.0
    %120 = vmatpush1.msra.mxu0 0.0
    %121 = vmatprep.subr.mxu0 0.0
    %122 = vmatpush1.msra.mxu0 0.0
    %123 = vmatprep.subr.mxu0 0.0
    %124 = vmatpush1.msra.mxu0 0.0
    %125 = vmatprep.subr.mxu0 0.0
    %126 = vmatpush1.msra.mxu0 0.0
    %127 = vmatprep.subr.mxu0 0.0
    %128 = vmatpush1.msra.mxu0 0.0
    %129 = vmatprep.subr.mxu0 0.0
    %130 = vmatpush1.msra.mxu0 0.0
    %131 = vmatprep.subr.mxu0 0.0
    %132 = vmatpush1.msra.mxu0 0.0
    %133 = vmatprep.subr.mxu0 0.0
    %134 = vmatpush1.msra.mxu0 0.0
    %135 = vmatprep.subr.mxu0 0.0
    %136 = vmatpush1.msra.mxu0 0.0
    %137 = vmatprep.subr.mxu0 0.0
    %138 = vmatpush1.msra.mxu0 0.0
    %139 = vmatprep.subr.mxu0 0.0
    %140 = vmatpush1.msra.mxu0 0.0
    %141 = vmatprep.subr.mxu0 0.0
    %142 = vmatpush1.msra.mxu0 0.0
    %143 = vmatprep.subr.mxu0 0.0
    %144 = vmatpush1.msra.mxu0 0.0
    %145 = vmatprep.mubr.f32.mxu0 0.0
    %146 = vmatmul.mubr.f32.gmra.mrb[0].mxu0 %v79
    %v147 = vpop.f32.mrb[0].mxu0
    %v148 = vadd.f32 0.0, %v147
    %v149 = vpop.f32.mrb[0].mxu0
    %150 = vdwg.mxu0
    %v151 = vmul.f32 %v148, 14.285714
    %v152 = vld [vmem:[#allocation10] sm:$0xff]
    %s153 = sadd.s32 0, 0
    %s154 = smul.u32 %s153, 128
    %p155 = scmp.lt.s32.totalorder %s154, 8
    %s156 = sadd.s32 %s154, 128
    %p157 = scmp.gt.s32.totalorder %s156, 16
    %p158 = por %p155, %p157
    // Predicated region
    $region30: #{tpu_custom_call.1} parent=1 // pred_check
      %p159 = pneg %p158
    $region31: #{tpu_custom_call.1} parent=1 // pred_check_branch
      %161 = sbr.rel (%p159) target = $region33
    $region32: #{tpu_custom_call.1} parent=1 // pred_region
      %v162 = vlaneseq
      %v163 = vand.u32 %v162, 127
      %v164 = vstv %s154
      %v165 = vadd.s32 %v164, %v163
      %v166 = vlaneseq
      %v167 = vshrl.u32 %v166, 7
      %vm168 = vcmp.lt.s32.totalorder %v165, 16
      %vm169 = vcmp.ne.s32.totalorder %v165, %v167
      %vm170 = vmand %vm168, %vm169
      %v171 = vsel %vm168, %v151, -inf
      %v172 = vsel %vm170, %v151, -inf
      %v173 = vsel %vm169, %v152, 0.0
      %174 = vmax.xlane.f32.xlu0 %v171
      %v175 = vpop.xlane.xlu0 %174
      %v176 = vld [vmem:[#allocation2] sm:$0xff]
      %v177 = vmax.f32 %v176, %v175
      %v178 = vsub.f32 %v176, %v177
      %v179 = vmul.f32 %v178, 1.442695
      %v180 = vpow.pop %v179
      %v181 = vld [vmem:[#allocation3] sm:$0xff]
      %v182 = vmul.f32 %v181, %v180
      %184 = vset.pattern.permute.xlu0 0
      %185 = vperm.xlu0 %184, %v177
      %v186 = vpop.permute.xlu0 %185
      %v188 = vsub.f32 %v172, %v186
      %v189 = vmul.f32 %v188, 1.442695
      %v190 = vpow.pop %v189
      %191 = vadd.xlane.f32.xlu0 %v190
      %v192 = vpop.xlane.xlu0 %191
      %v193 = vadd.f32 %v182, %v192
      %vm194 = vcmask 7168
      %195 = vst.msk [vmem:[#allocation3] sm:$0xff] %vm194, %v193
      %196 = vst.msk [vmem:[#allocation2] sm:$0xff] %vm194, %v177
      %v197 = vld [vmem:[#allocation4] sm:$0xff]
      %v198 = vmul.f32 %v173, %v151
      %199 = vadd.xlane.f32.xlu0 %v198
      %v200 = vpop.xlane.xlu0 %199
      %v201 = vadd.f32 %v197, %v200
      %202 = vst.msk [vmem:[#allocation4] sm:$0xff] %vm194, %v201
      %v203 = vld [vmem:[#allocation5] sm:$0xff]
      %204 = vadd.xlane.f32.xlu0 %v173
      %v205 = vpop.xlane.xlu0 %204
      %v206 = vadd.f32 %v203, %v205
      %207 = vst.msk [vmem:[#allocation5] sm:$0xff] %vm194, %v206
    $region33: #{tpu_custom_call.1} parent=1 // pred_fallthru
      _
    %p208 = pneg %p158
    // Predicated region
    $region34: #{tpu_custom_call.1} parent=1 // pred_check
      _
    $region35: #{tpu_custom_call.1} parent=1 // pred_check_branch
      %210 = sbr.rel (%p158) target = $region37
    $region36: #{tpu_custom_call.1} parent=1 // pred_region
      %211 = vmax.xlane.f32.xlu0 %v151
      %v212 = vpop.xlane.xlu0 %211
      %v213 = vld [vmem:[#allocation2] sm:$0xff]
      %v214 = vmax.f32 %v213, %v212
      %v215 = vsub.f32 %v213, %v214
      %v216 = vmul.f32 %v215, 1.442695
      %v217 = vpow.pop %v216
      %v218 = vld [vmem:[#allocation3] sm:$0xff]
      %v219 = vmul.f32 %v218, %v217
      %221 = vset.pattern.permute.xlu0 0
      %222 = vperm.xlu0 %221, %v214
      %v223 = vpop.permute.xlu0 %222
      %v225 = vsub.f32 %v151, %v223
      %v226 = vmul.f32 %v225, 1.442695
      %v227 = vpow.pop %v226
      %228 = vadd.xlane.f32.xlu0 %v227
      %v229 = vpop.xlane.xlu0 %228
      %v230 = vadd.f32 %v219, %v229
      %vm231 = vcmask 7168
      %232 = vst.msk [vmem:[#allocation3] sm:$0xff] %vm231, %v230
      %233 = vst.msk [vmem:[#allocation2] sm:$0xff] %vm231, %v214
      %v234 = vld [vmem:[#allocation4] sm:$0xff]
      %v235 = vmul.f32 %v152, %v151
      %236 = vadd.xlane.f32.xlu0 %v235
      %v237 = vpop.xlane.xlu0 %236
      %v238 = vadd.f32 %v234, %v237
      %239 = vst.msk [vmem:[#allocation4] sm:$0xff] %vm231, %v238
      %v240 = vld [vmem:[#allocation5] sm:$0xff]
      %241 = vadd.xlane.f32.xlu0 %v152
      %v242 = vpop.xlane.xlu0 %241
      %v243 = vadd.f32 %v240, %v242
      %244 = vst.msk [vmem:[#allocation5] sm:$0xff] %vm231, %v243
    $region37: #{tpu_custom_call.1} parent=1 // pred_fallthru
      _
    // Predicated region
    $region38: #{tpu_custom_call.1} parent=1 // pred_check
      %p245 = pneg %p63
    $region39: #{tpu_custom_call.1} parent=1 // pred_check_branch
      %247 = sbr.rel (%p245) target = $region41
    $region40: #{tpu_custom_call.1} parent=1 // pred_region
      %v248 = vld [vmem:[#allocation2] sm:$0xff]
      %vm249 = vcmask 7168
      %250 = vst.msk [vmem:[%s3] sm:$0xff] %vm249, %v248
      %v251 = vld [vmem:[#allocation3] sm:$0xff]
      %252 = vst.msk [vmem:[%s4] sm:$0xff] %vm249, %v251
      %v253 = vld [vmem:[#allocation4] sm:$0xff]
      %254 = vst.msk [vmem:[%s5] sm:$0xff] %vm249, %v253
      %v255 = vld [vmem:[#allocation5] sm:$0xff]
      %256 = vst.msk [vmem:[%s6] sm:$0xff] %vm249, %v255
    $region41: #{tpu_custom_call.1} parent=1 // pred_fallthru
      _
    // Predicated region
    $region42: #{tpu_custom_call.1} parent=1 // pred_check
      _
    $region43: #{tpu_custom_call.1} parent=1 // pred_check_branch
      %258 = sbr.rel (0) target = $region45
    $region44: #{tpu_custom_call.1} parent=1 // pred_region
      _
    $region45: #{tpu_custom_call.1} parent=1 // pred_fallthru
      _
    // Predicated region
    $region46: #{tpu_custom_call.1} parent=1 // pred_check
      _
    $region47: #{tpu_custom_call.1} parent=1 // pred_check_branch
      %260 = sbr.rel (0) target = $region49
    $region48: #{tpu_custom_call.1} parent=1 // pred_region
      _
    $region49: #{tpu_custom_call.1} parent=1 // pred_fallthru
      _
    // Predicated region
    $region50: #{tpu_custom_call.1} parent=1 // pred_check
      _
    $region51: #{tpu_custom_call.1} parent=1 // pred_check_branch
      %262 = sbr.rel (0) target = $region53
    $region52: #{tpu_custom_call.1} parent=1 // pred_region
      _
    $region53: #{tpu_custom_call.1} parent=1 // pred_fallthru
      _
    // Predicated region
    $region54: #{tpu_custom_call.1} parent=1 // pred_check
      _
    $region55: #{tpu_custom_call.1} parent=1 // pred_check_branch
      %264 = sbr.rel (0) target = $region57
    $region56: #{tpu_custom_call.1} parent=1 // pred_region
      _
    $region57: #{tpu_custom_call.1} parent=1 // pred_fallthru
      _
    // Predicated region
    $region58: #{tpu_custom_call.1} parent=1 // pred_check
      _
    $region59: #{tpu_custom_call.1} parent=1 // pred_check_branch
      %266 = sbr.rel (0) target = $region61
    $region60: #{tpu_custom_call.1} parent=1 // pred_region
      _
    $region61: #{tpu_custom_call.1} parent=1 // pred_fallthru
      _
    // Predicated region
    $region62: #{tpu_custom_call.1} parent=1 // pred_check
      _
    $region63: #{tpu_custom_call.1} parent=1 // pred_check_branch
      %268 = sbr.rel (0) target = $region65
    $region64: #{tpu_custom_call.1} parent=1 // pred_region
      _
    $region65: #{tpu_custom_call.1} parent=1 // pred_fallthru
      _
    // Predicated region
    $region66: #{tpu_custom_call.1} parent=1 // pred_check
      _
    $region67: #{tpu_custom_call.1} parent=1 // pred_check_branch
      %270 = sbr.rel (0) target = $region69
    $region68: #{tpu_custom_call.1} parent=1 // pred_region
      _
    $region69: #{tpu_custom_call.1} parent=1 // pred_fallthru
      _
    // Predicated region
    $region70: #{tpu_custom_call.1} parent=1 // pred_check
      _
    $region71: #{tpu_custom_call.1} parent=1 // pred_check_branch
      %272 = sbr.rel (0) target = $region73
    $region72: #{tpu_custom_call.1} parent=1 // pred_region
      _
    $region73: #{tpu_custom_call.1} parent=1 // pred_fallthru
      _
    %273 = vsyncpa [#allocation7], 1
    %274 = vsyncpa [#allocation9], 1

</llo_original>
